<compile_context>
chip_gen: v6e
topology: v6e:2x2x1
jax: 0.10.0
libtpu: 0.0.40
codegen_flags: <defaults>
</compile_context>

<pallas_src>
import functools

import jax
import jax.numpy as jnp
from jax import lax
from jax.experimental import pallas as pl
from jax.experimental.pallas import tpu as pltpu


# ----------------------------- helpers ---------------------------------------


def _layernorm(x, w, b, eps=1e-5):
    # PyTorch nn.LayerNorm: biased variance, eps inside sqrt.
    mu = jnp.mean(x, axis=-1, keepdims=True)
    var = jnp.mean((x - mu) ** 2, axis=-1, keepdims=True)
    return (x - mu) * lax.rsqrt(var + eps) * w + b


def _pick_tile(n, target):
    """Largest tile <= target that divides n (multiple of 8 when possible)."""
    t = min(n, target)
    while t > 8 and n % t:
        t -= 8
    return t if (t > 0 and n % t == 0) else n


# ----------------------------- kernel 1: LN1 + fused QKV ----------------------


def _ln_qkv_kernel(cd, x_ref, ln1w_ref, ln1b_ref, wqkv_ref, bqkv_ref, qkv_ref):
    x = x_ref[...]                                            # (TM, E) f32
    n1 = _layernorm(x, ln1w_ref[...], ln1b_ref[...])          # f32
    qkv = jnp.dot(n1.astype(cd), wqkv_ref[...],               # (TM, 3E), f32 accumulate
                  preferred_element_type=jnp.float32) + bqkv_ref[...]
    qkv_ref[...] = qkv.astype(qkv_ref.dtype)


# ----------------------------- kernel 2: causal flash attention ---------------


def _flash_attn_kernel(scale, tq, tk, cd,
                       q_ref, k_ref, v_ref, o_ref, m_sc, l_sc, acc_sc):
    qi = pl.program_id(1)
    ki = pl.program_id(2)
    nk = pl.num_programs(2)

    @pl.when(ki == 0)
    def _init():
        m_sc[...] = jnp.full((tq, 1), -jnp.inf, jnp.float32)
        l_sc[...] = jnp.zeros((tq, 1), jnp.float32)
        acc_sc[...] = jnp.zeros(acc_sc.shape, jnp.float32)

    # Skip kv blocks that lie entirely above the causal diagonal.
    @pl.when(ki * tk <= qi * tq + (tq - 1))
    def _compute():
        q = (q_ref[0] * scale).astype(cd)                     # (tq, D), scale applied to q
        k = k_ref[0].astype(cd)                               # (tk, D)
        s = lax.dot_general(q, k, (((1,), (1,)), ((), ())),
                            preferred_element_type=jnp.float32)   # (tq, tk)

        # per-tile causal mask (two small iotas; no (B,S,S) tensor anywhere)
        row = qi * tq + lax.broadcasted_iota(jnp.int32, (tq, tk), 0)
        col = ki * tk + lax.broadcasted_iota(jnp.int32, (tq, tk), 1)
        s = jnp.where(col <= row, s, -jnp.inf)

        m_prev = m_sc[...]
        m_new = jnp.maximum(m_prev, jnp.max(s, axis=-1, keepdims=True))
        alpha = jnp.exp(m_prev - m_new)
        p = jnp.exp(s - m_new)                                # unnormalized
        l_sc[...] = alpha * l_sc[...] + jnp.sum(p, axis=-1, keepdims=True)
        acc_sc[...] = alpha * acc_sc[...] + jnp.dot(
            p.astype(cd), v_ref[0].astype(cd), preferred_element_type=jnp.float32)
        m_sc[...] = m_new

    @pl.when(ki == nk - 1)
    def _finalize():
        # normalize AFTER the PV matmul: tq*D multiplies instead of tq*tk
        o_ref[0] = (acc_sc[...] * pl.reciprocal(l_sc[...], approx=True)).astype(o_ref.dtype)


# ----------------------------- kernel 3: out-proj + MLP -----------------------


def _out_mlp_kernel(cd, x_ref, ctx_ref, wo_ref, bo_ref, ln2w_ref, ln2b_ref,
                    w1_ref, b1_ref, w2_ref, b2_ref, o_ref):
    x = x_ref[...]                                            # (TM, E) f32
    # single full-K=E output projection (heads already concatenated in the wrapper)
    attn = jnp.dot(ctx_ref[...].astype(cd), wo_ref[...],
                   preferred_element_type=jnp.float32) + bo_ref[...]
    x1 = x + attn                                             # residual (dropout == identity)

    n2 = _layernorm(x1, ln2w_ref[...], ln2b_ref[...])
    h1 = jnp.dot(n2.astype(cd), w1_ref[...],
                 preferred_element_type=jnp.float32) + b1_ref[...]
    # exact GELU (erf form) -> matches PyTorch nn.GELU() default
    g = 0.5 * h1 * (1.0 + lax.erf(h1 * (2.0 ** -0.5)))
    y = x1 + jnp.dot(g.astype(cd), w2_ref[...],
                     preferred_element_type=jnp.float32) + b2_ref[...]
    o_ref[...] = y.astype(o_ref.dtype)


# ----------------------------- wrapper ---------------------------------------


def transformer_block(x, params, num_heads, *, compute_dtype=jnp.bfloat16,
                      token_tile=None, q_tile=None, kv_tile=None):
    B, S, E = x.shape
    H = num_heads
    D = E // H
    HID = params["w1"].shape[1]
    M = B * S
    cd = compute_dtype

    tm = token_tile or _pick_tile(M, 256)
    tq = q_tile or _pick_tile(S, 128)
    tk = kv_tile or _pick_tile(S, 128)
    assert M % tm == 0 and S % tq == 0 and S % tk == 0

    # Weights prepared once in the wrapper: fused QKV, compute-dtype cast (halves DMA bytes).
    wqkv = jnp.concatenate([params["wq"], params["wk"], params["wv"]], axis=1).astype(cd)
    bqkv = jnp.concatenate([params["bq"], params["bk"], params["bv"]]).reshape(1, 3 * E)
    wo = params["wo"].astype(cd)
    w1 = params["w1"].astype(cd)
    w2 = params["w2"].astype(cd)

    ln1w = params["ln1_w"].reshape(1, E)
    ln1b = params["ln1_b"].reshape(1, E)
    ln2w = params["ln2_w"].reshape(1, E)
    ln2b = params["ln2_b"].reshape(1, E)
    bo = params["bo"].reshape(1, E)
    b1 = params["b1"].reshape(1, HID)
    b2 = params["b2"].reshape(1, E)

    xf = x.reshape(M, E)

    # -------- stage 1: LN1 + fused QKV projection (token-tiled, parallel) --------
    qkv = pl.pallas_call(
        functools.partial(_ln_qkv_kernel, cd),
        out_shape=jax.ShapeDtypeStruct((M, 3 * E), jnp.float32),
        grid_spec=pltpu.PrefetchScalarGridSpec(
            num_scalar_prefetch=0,
            grid=(M // tm,),
            in_specs=[
                pl.BlockSpec((tm, E), lambda i: (i, 0)),
                pl.BlockSpec((1, E), lambda i: (0, 0)),
                pl.BlockSpec((1, E), lambda i: (0, 0)),
                pl.BlockSpec((E, 3 * E), lambda i: (0, 0)),   # weight stays resident
                pl.BlockSpec((1, 3 * E), lambda i: (0, 0)),
            ],
            out_specs=pl.BlockSpec((tm, 3 * E), lambda i: (i, 0)),
        ),
        compiler_params=pltpu.CompilerParams(dimension_semantics=("parallel",)),
    )(xf, ln1w, ln1b, wqkv, bqkv)

    # Per-head layout for attention (plain XLA reshapes/transposes, outside the kernel).
    qkv5 = qkv.reshape(B, S, 3, H, D).transpose(2, 0, 3, 1, 4)    # (3, B, H, S, D)
    q = qkv5[0].reshape(B * H, S, D)
    k = qkv5[1].reshape(B * H, S, D)
    v = qkv5[2].reshape(B * H, S, D)

    scale = 1.0 / (D ** 0.5)

    # -------- stage 2: causal flash attention, grid (B*H, q_tiles, kv_tiles) --------
    ctx = pl.pallas_call(
        functools.partial(_flash_attn_kernel, scale, tq, tk, cd),
        out_shape=jax.ShapeDtypeStruct((B * H, S, D), jnp.float32),
        grid_spec=pltpu.PrefetchScalarGridSpec(
            num_scalar_prefetch=0,
            grid=(B * H, S // tq, S // tk),
            in_specs=[
                pl.BlockSpec((1, tq, D), lambda bh, qi, ki: (bh, qi, 0)),
                pl.BlockSpec((1, tk, D), lambda bh, qi, ki: (bh, ki, 0)),
                pl.BlockSpec((1, tk, D), lambda bh, qi, ki: (bh, ki, 0)),
            ],
            out_specs=pl.BlockSpec((1, tq, D), lambda bh, qi, ki: (bh, qi, 0)),
            scratch_shapes=[
                pltpu.VMEM((tq, 1), jnp.float32),   # running max m
                pltpu.VMEM((tq, 1), jnp.float32),   # running denom l
                pltpu.VMEM((tq, D), jnp.float32),   # output accumulator
            ],
        ),
        compiler_params=pltpu.CompilerParams(
            dimension_semantics=("parallel", "parallel", "arbitrary")),
    )(q, k, v)

    # Concatenate heads back to (B*S, E) so the output projection is one full-K matmul.
    ctxf = ctx.reshape(B, H, S, D).transpose(0, 2, 1, 3).reshape(M, E)

    # -------- stage 3: out-proj + residual + LN2 + MLP + residual (token-tiled) --------
    y = pl.pallas_call(
        functools.partial(_out_mlp_kernel, cd),
        out_shape=jax.ShapeDtypeStruct((M, E), jnp.float32),
        grid_spec=pltpu.PrefetchScalarGridSpec(
            num_scalar_prefetch=0,
            grid=(M // tm,),
            in_specs=[
                pl.BlockSpec((tm, E), lambda i: (i, 0)),      # x (residual stream)
                pl.BlockSpec((tm, E), lambda i: (i, 0)),      # attention context
                pl.BlockSpec((E, E), lambda i: (0, 0)),       # wo
                pl.BlockSpec((1, E), lambda i: (0, 0)),       # bo
                pl.BlockSpec((1, E), lambda i: (0, 0)),       # ln2 w
                pl.BlockSpec((1, E), lambda i: (0, 0)),       # ln2 b
                pl.BlockSpec((E, HID), lambda i: (0, 0)),     # w1
                pl.BlockSpec((1, HID), lambda i: (0, 0)),     # b1
                pl.BlockSpec((HID, E), lambda i: (0, 0)),     # w2
                pl.BlockSpec((1, E), lambda i: (0, 0)),       # b2
            ],
            out_specs=pl.BlockSpec((tm, E), lambda i: (i, 0)),
        ),
        compiler_params=pltpu.CompilerParams(dimension_semantics=("parallel",)),
    )(xf, ctxf, wo, bo, ln2w, ln2b, w1, b1, w2, b2)

    return y.reshape(B, S, E)


# ----------------------------- pure-JAX reference -----------------------------


def reference_forward(x, p, mask, num_heads):
    def ln(v, w, b, eps=1e-5):
        mu = v.mean(-1, keepdims=True)
        var = ((v - mu) ** 2).mean(-1, keepdims=True)
        return (v - mu) / jnp.sqrt(var + eps) * w + b

    B, S, E = x.shape
    H, D = num_heads, E // num_heads

    n1 = ln(x, p["ln1_w"], p["ln1_b"])
    q = n1 @ p["wq"] + p["bq"]
    k = n1 @ p["wk"] + p["bk"]
    v = n1 @ p["wv"] + p["bv"]
    q = q.reshape(B, S, H, D).transpose(0, 2, 1, 3)
    k = k.reshape(B, S, H, D).transpose(0, 2, 1, 3)
    v = v.reshape(B, S, H, D).transpose(0, 2, 1, 3)
    s = jnp.einsum("bhqd,bhkd->bhqk", q, k) / jnp.sqrt(jnp.float32(D)) + mask
    a = jax.nn.softmax(s, axis=-1)
    o = jnp.einsum("bhqk,bhkd->bhqd", a, v).transpose(0, 2, 1, 3).reshape(B, S, E)
    attn = o @ p["wo"] + p["bo"]
    x1 = x + attn
    n2 = ln(x1, p["ln2_w"], p["ln2_b"])
    h1 = n2 @ p["w1"] + p["b1"]
    g = 0.5 * h1 * (1.0 + jax.lax.erf(h1 / jnp.sqrt(jnp.float32(2.0))))
    return x1 + g @ p["w2"] + p["b2"]


# ----------------------------- main ---------------------------------------


if __name__ == "__main__":
    B, S, E, H = 2, 16, 32, 4         # batch, seq_len, embedding_dim, num_heads
    HID = 4 * E

    key = jax.random.PRNGKey(0)
    ks = jax.random.split(key, 13)

    def w(k, shape, scale=0.05):
        return (scale * jax.random.normal(k, shape)).astype(jnp.float32)

    # Deterministic synthetic parameters (shapes follow the nn.Module __init__).
    params = {
        "ln1_w": jnp.ones((E,), jnp.float32),
        "ln1_b": jnp.zeros((E,), jnp.float32),
        "wq": w(ks[0], (E, E)),  "wk": w(ks[1], (E, E)),  "wv": w(ks[2], (E, E)),
        "bq": w(ks[3], (E,)),    "bk": w(ks[4], (E,)),    "bv": w(ks[5], (E,)),
        "wo": w(ks[6], (E, E)),  "bo": w(ks[7], (E,)),
        "ln2_w": jnp.ones((E,), jnp.float32),
        "ln2_b": jnp.zeros((E,), jnp.float32),
        "w1": w(ks[8], (E, HID)), "b1": w(ks[9], (HID,)),
        "w2": w(ks[10], (HID, E)), "b2": w(ks[11], (E,)),
    }

    # Reference-side causal mask: -inf for j > i, else 0 (matches the triu buffer).
    rows = jnp.arange(S)[:, None]
    cols = jnp.arange(S)[None, :]
    causal_mask = jnp.where(cols > rows, -jnp.inf, 0.0).astype(jnp.float32)

    x = jax.random.normal(ks[12], (B, S, E), jnp.float32)

    ref = reference_forward(x, params, causal_mask, H)

    # bf16-MXU path (default; small tiles chosen to exercise the pipelines at toy size).
    out_bf16 = jax.block_until_ready(
        transformer_block(x, params, H, compute_dtype=jnp.bfloat16,
                          token_tile=8, q_tile=8, kv_tile=8))
    assert out_bf16.shape == (B, S, E)
    err_bf16 = float(jnp.max(jnp.abs(out_bf16 - ref)))
    assert err_bf16 < 2e-2, err_bf16

    # f32 validation path at tight tolerance.
    out_f32 = jax.block_until_ready(
        transformer_block(x, params, H, compute_dtype=jnp.float32,
                          token_tile=8, q_tile=8, kv_tile=8))
    err_f32 = float(jnp.max(jnp.abs(out_f32 - ref)))
    assert err_f32 < 1e-3, err_f32

    print("KERNEL_OK")
</pallas_src>

<mosaic_0001>
module attributes {stable_mosaic.version = 11 : i64} {
  func.func @_ln_qkv_kernel(%arg0: i32, %arg1: memref<8x32xf32, #tpu.memory_space<vmem>>, %arg2: memref<1x32xf32, #tpu.memory_space<vmem>>, %arg3: memref<1x32xf32, #tpu.memory_space<vmem>>, %arg4: memref<32x96xbf16, #tpu.memory_space<vmem>>, %arg5: memref<1x96xf32, #tpu.memory_space<vmem>>, %arg6: memref<8x96xf32, #tpu.memory_space<vmem>>) attributes {dimension_semantics = [#tpu.dimension_semantics<parallel>], iteration_bounds = array<i64: 4>, scalar_prefetch = 0 : i64, scratch_operands = 0 : i64, tpu.core_type = #tpu.core_type<tc>, window_params = [{transform_indices = @transform_0, window_bounds = array<i64: 8, 32>}, {pipeline_mode = #tpu.pipeline_mode<synchronous>, transform_indices = @transform_1, window_bounds = array<i64: 1, 32>}, {pipeline_mode = #tpu.pipeline_mode<synchronous>, transform_indices = @transform_2, window_bounds = array<i64: 1, 32>}, {pipeline_mode = #tpu.pipeline_mode<synchronous>, transform_indices = @transform_3, window_bounds = array<i64: 32, 96>}, {pipeline_mode = #tpu.pipeline_mode<synchronous>, transform_indices = @transform_4, window_bounds = array<i64: 1, 96>}, {transform_indices = @transform_5, window_bounds = array<i64: 8, 96>}]} {
    %c0 = arith.constant 0 : index
    %c0_0 = arith.constant 0 : index
    %0 = vector.load %arg1[%c0, %c0_0] : memref<8x32xf32, #tpu.memory_space<vmem>>, vector<8x32xf32>
    %c0_1 = arith.constant 0 : index
    %c0_2 = arith.constant 0 : index
    %1 = vector.load %arg2[%c0_1, %c0_2] : memref<1x32xf32, #tpu.memory_space<vmem>>, vector<1x32xf32>
    %c0_3 = arith.constant 0 : index
    %c0_4 = arith.constant 0 : index
    %2 = vector.load %arg3[%c0_3, %c0_4] : memref<1x32xf32, #tpu.memory_space<vmem>>, vector<1x32xf32>
    %cst = arith.constant dense<0.000000e+00> : vector<8xf32>
    %3 = vector.multi_reduction <add>, %0, %cst [1] : vector<8x32xf32> to vector<8xf32>
    %4 = vector.shape_cast %3 : vector<8xf32> to vector<8x1xf32>
    %cst_5 = arith.constant 3.200000e+01 : f32
    %5 = vector.broadcast %cst_5 : f32 to vector<8x1xf32>
    %6 = arith.divf %4, %5 : vector<8x1xf32>
    %7 = vector.broadcast %6 : vector<8x1xf32> to vector<8x32xf32>
    %8 = arith.subf %0, %7 : vector<8x32xf32>
    %9 = arith.mulf %8, %8 : vector<8x32xf32>
    %cst_6 = arith.constant dense<0.000000e+00> : vector<8xf32>
    %10 = vector.multi_reduction <add>, %9, %cst_6 [1] : vector<8x32xf32> to vector<8xf32>
    %11 = vector.shape_cast %10 : vector<8xf32> to vector<8x1xf32>
    %cst_7 = arith.constant 3.200000e+01 : f32
    %12 = vector.broadcast %cst_7 : f32 to vector<8x1xf32>
    %13 = arith.divf %11, %12 : vector<8x1xf32>
    %14 = vector.broadcast %6 : vector<8x1xf32> to vector<8x32xf32>
    %15 = arith.subf %0, %14 : vector<8x32xf32>
    %cst_8 = arith.constant 9.99999974E-6 : f32
    %16 = vector.broadcast %cst_8 : f32 to vector<8x1xf32>
    %17 = arith.addf %13, %16 : vector<8x1xf32>
    %18 = math.rsqrt %17 : vector<8x1xf32>
    %19 = vector.broadcast %18 : vector<8x1xf32> to vector<8x32xf32>
    %20 = arith.mulf %15, %19 : vector<8x32xf32>
    %21 = vector.broadcast %1 : vector<1x32xf32> to vector<8x32xf32>
    %22 = arith.mulf %20, %21 : vector<8x32xf32>
    %23 = vector.broadcast %2 : vector<1x32xf32> to vector<8x32xf32>
    %24 = arith.addf %22, %23 : vector<8x32xf32>
    %25 = arith.truncf %24 : vector<8x32xf32> to vector<8x32xbf16>
    %c0_9 = arith.constant 0 : index
    %c0_10 = arith.constant 0 : index
    %26 = vector.load %arg4[%c0_9, %c0_10] : memref<32x96xbf16, #tpu.memory_space<vmem>>, vector<32x96xbf16>
    %cst_11 = arith.constant dense<0.000000e+00> : vector<8x96xf32>
    %27 = tpu.matmul %25, %26, %cst_11 {dimension_numbers = #tpu.dot_dimension_numbers<[1], [0], [0], [1], [0, 0, 1, 1], [], []>} : vector<8x32xbf16>, vector<32x96xbf16>, vector<8x96xf32> -> vector<8x96xf32>
    %c0_12 = arith.constant 0 : index
    %c0_13 = arith.constant 0 : index
    %28 = vector.load %arg5[%c0_12, %c0_13] : memref<1x96xf32, #tpu.memory_space<vmem>>, vector<1x96xf32>
    %29 = vector.broadcast %28 : vector<1x96xf32> to vector<8x96xf32>
    %30 = arith.addf %27, %29 : vector<8x96xf32>
    %c0_14 = arith.constant 0 : index
    %c0_15 = arith.constant 0 : index
    %31 = vector.load %arg6[%c0_14, %c0_15] : memref<8x96xf32, #tpu.memory_space<vmem>>, vector<8x96xf32>
    tpu.vector_store %arg6[%c0_14, %c0_15], %30 {strides = array<i32>} : memref<8x96xf32, #tpu.memory_space<vmem>>, vector<8x96xf32>,
    return
  }
  func.func @transform_0(%arg0: i32) -> (i32, i32) {
    %c0_i32 = arith.constant 0 : i32
    %c0_i32_0 = arith.constant 0 : i32
    return %arg0, %c0_i32 : i32, i32
  }
  func.func @transform_1(%arg0: i32) -> (i32, i32) {
    %c0_i32 = arith.constant 0 : i32
    %c0_i32_0 = arith.constant 0 : i32
    %c0_i32_1 = arith.constant 0 : i32
    return %c0_i32, %c0_i32_0 : i32, i32
  }
  func.func @transform_2(%arg0: i32) -> (i32, i32) {
    %c0_i32 = arith.constant 0 : i32
    %c0_i32_0 = arith.constant 0 : i32
    %c0_i32_1 = arith.constant 0 : i32
    return %c0_i32, %c0_i32_0 : i32, i32
  }
  func.func @transform_3(%arg0: i32) -> (i32, i32) {
    %c0_i32 = arith.constant 0 : i32
    %c0_i32_0 = arith.constant 0 : i32
    %c0_i32_1 = arith.constant 0 : i32
    return %c0_i32, %c0_i32_0 : i32, i32
  }
  func.func @transform_4(%arg0: i32) -> (i32, i32) {
    %c0_i32 = arith.constant 0 : i32
    %c0_i32_0 = arith.constant 0 : i32
    %c0_i32_1 = arith.constant 0 : i32
    return %c0_i32, %c0_i32_0 : i32, i32
  }
  func.func @transform_5(%arg0: i32) -> (i32, i32) {
    %c0_i32 = arith.constant 0 : i32
    %c0_i32_0 = arith.constant 0 : i32
    return %arg0, %c0_i32 : i32, i32
  }
}

</mosaic_0001>

<llo_original>
// kernel: tpu_custom_call.1
$region0: #{tpu_custom_call.1}
  #allocation0 [shape = 'u32[]', space=smem, size = 0x4, offset = 0x4, fixed_abs, tag = 'smem constant byte address 0x4 - core index']
  #allocation1 [shape = 'u32[144,128]{1,0:T(1,128)}', space=vmem, size = 0x12000, scoped, tag = 'internal scratch']
  %s0 = inlined_call_operand.hbm [shape: f32[32,32], index: 0, kind: input, shape index: {}]
  %s1 = inlined_call_operand.vmem [shape: f32[1,32], index: 1, kind: input, shape index: {}]
  %s2 = inlined_call_operand.vmem [shape: f32[1,32], index: 2, kind: input, shape index: {}]
  %s3 = inlined_call_operand.hbm [shape: bf16[32,96], index: 3, kind: input, shape index: {}]
  %s4 = inlined_call_operand.vmem [shape: f32[1,96], index: 4, kind: input, shape index: {}]
  %s5 = inlined_call_operand.hbm [shape: f32[32,96], index: 5, kind: output, shape index: {}]
  %s6 = sld [smem:[#allocation0]]
  $region61: #{tpu_custom_call.1} parent=0
    _
  %s8 = ssub.s32 1, %s6
  %s9 = scalar_select 0, %s8, %s6
  $region1: #{tpu_custom_call.1} parent=0
    #allocation2 [shape = 'u8[8192]{0}', space=vmem, size = 0x2000, scoped, tag = 'input window, operand 0']
    #allocation3 [shape = 's32[2]{0}', space=sflag, size = 0x8, scoped, tag = 'scoped memory for tpu_custom_call.1']
    #allocation4 [shape = 's32[2]{0}', space=sflag, size = 0x8, scoped, tag = 'scoped memory for tpu_custom_call.1']
    #allocation5 [shape = 'u8[8192]{0}', space=vmem, size = 0x2000, scoped, tag = 'input window, operand 3, single buffered']
    #allocation6 [shape = 's32[1]{0}', space=sflag, size = 0x4, scoped, tag = 'scoped memory for tpu_custom_call.1']
    #allocation7 [shape = 'u8[8192]{0}', space=vmem, size = 0x2000, scoped, tag = 'output window, operand 0']
    %10 = vsyncpa [#allocation3], 0
    %s11 = scalar_lea.sflag [#allocation3], 1
    %12 = vsyncpa %s11, 0
    %13 = vsyncpa [#allocation6], 0
    %14 = vsyncpa [#allocation4], 0
    %s15 = scalar_lea.sflag [#allocation4], 1
    %16 = vsyncpa %s15, 0
    loop: start=0, step=1, limit=6
    $region2: #{tpu_custom_call.1} parent=1 // loop_pre_header
      _
    $region3: #{tpu_custom_call.1} parent=1 // loop_header
      %s18 = sphi 0, %s22
      %p19 = scmp.ge.s32.totalorder %s18, 6
      %s28 = sphi 0, %s30
      %s31 = sphi 0, %s28
      %s32 = sphi 0, %s31
      %s48 = sphi 0, %s32
      %s52 = sphi 0, %s52
      %s54 = sphi 0, %s52
      %s55 = sphi 0, %s54
      %s69 = sphi 0, %s55
      %s73 = sphi 0, %s73
      %s75 = sphi 0, %s73
      %s76 = sphi 0, %s75
      %s90 = sphi 0, %s76
      %s94 = sphi 0, %s94
      %s96 = sphi 0, %s94
      %s97 = sphi 0, %s96
      %s111 = sphi 0, %s97
      %s115 = sphi 0, %s115
      %s117 = sphi 0, %s115
      %s118 = sphi 0, %s117
      %s132 = sphi 0, %s118
      %s138 = sphi 0, %s140
      %s141 = sphi 0, %s138
      %s142 = sphi 0, %s141
      %s158 = sphi 0, %s142
    $region4: #{tpu_custom_call.1} parent=1 // loop_header_branch
      %21 = sbr.rel (%p19) target = $region8
    $region5: #{tpu_custom_call.1} parent=1 // loop_body
      %s23 = ssub.s32 %s18, 1
      %s24 = ssub.s32 %s18, 2
      %s25 = sadd.s32 %s18, 1
      %s26 = ssub.s32 %s18, %s25
      %p27 = scmp.eq.s32.totalorder %s26, 0
      %s29 = sadd.s32 %s28, 1
      %s30 = scalar_select %p27, %s28, %s29
      %p33 = pneg %p27
      %p34 = scmp.eq.s32.totalorder %s18, 3
      %p35 = por %p33, %p34
      %p36 = scmp.ne.s32.totalorder %s28, %s31
      %p37 = scmp.eq.s32.totalorder %s18, 0
      %p38 = por %p36, %p37
      %p39 = scmp.ne.s32.totalorder %s28, %s31
      %p40 = scmp.eq.s32.totalorder %s23, 3
      %p41 = por %p39, %p40
      %p42 = scmp.ne.s32.totalorder %s31, %s32
      %p43 = scmp.eq.s32.totalorder %s23, 0
      %p44 = por %p42, %p43
      %p45 = scmp.ne.s32.totalorder %s31, %s32
      %p46 = scmp.eq.s32.totalorder %s24, 3
      %p47 = por %p45, %p46
      %p49 = scmp.ne.s32.totalorder %s32, %s48
      %p50 = scmp.eq.s32.totalorder %s24, 0
      %p51 = por %p49, %p50
      %s53 = sadd.s32 %s52, 1
      %p56 = scmp.eq.s32.totalorder %s18, 3
      %p57 = scmp.ne.s32.totalorder %s52, %s54
      %p58 = scmp.eq.s32.totalorder %s18, 0
      %p59 = por %p57, %p58
      %p60 = scmp.ne.s32.totalorder %s52, %s54
      %p61 = scmp.eq.s32.totalorder %s23, 3
      %p62 = por %p60, %p61
      %p63 = scmp.ne.s32.totalorder %s54, %s55
      %p64 = scmp.eq.s32.totalorder %s23, 0
      %p65 = por %p63, %p64
      %p66 = scmp.ne.s32.totalorder %s54, %s55
      %p67 = scmp.eq.s32.totalorder %s24, 3
      %p68 = por %p66, %p67
      %p70 = scmp.ne.s32.totalorder %s55, %s69
      %p71 = scmp.eq.s32.totalorder %s24, 0
      %p72 = por %p70, %p71
      %s74 = sadd.s32 %s73, 1
      %p77 = scmp.eq.s32.totalorder %s18, 3
      %p78 = scmp.ne.s32.totalorder %s73, %s75
      %p79 = scmp.eq.s32.totalorder %s18, 0
      %p80 = por %p78, %p79
      %p81 = scmp.ne.s32.totalorder %s73, %s75
      %p82 = scmp.eq.s32.totalorder %s23, 3
      %p83 = por %p81, %p82
      %p84 = scmp.ne.s32.totalorder %s75, %s76
      %p85 = scmp.eq.s32.totalorder %s23, 0
      %p86 = por %p84, %p85
      %p87 = scmp.ne.s32.totalorder %s75, %s76
      %p88 = scmp.eq.s32.totalorder %s24, 3
      %p89 = por %p87, %p88
      %p91 = scmp.ne.s32.totalorder %s76, %s90
      %p92 = scmp.eq.s32.totalorder %s24, 0
      %p93 = por %p91, %p92
      %s95 = sadd.s32 %s94, 1
      %p98 = scmp.eq.s32.totalorder %s18, 3
      %p99 = scmp.ne.s32.totalorder %s94, %s96
      %p100 = scmp.eq.s32.totalorder %s18, 0
      %p101 = por %p99, %p100
      %p102 = scmp.ne.s32.totalorder %s94, %s96
      %p103 = scmp.eq.s32.totalorder %s23, 3
      %p104 = por %p102, %p103
      %p105 = scmp.ne.s32.totalorder %s96, %s97
      %p106 = scmp.eq.s32.totalorder %s23, 0
      %p107 = por %p105, %p106
      %p108 = scmp.ne.s32.totalorder %s96, %s97
      %p109 = scmp.eq.s32.totalorder %s24, 3
      %p110 = por %p108, %p109
      %p112 = scmp.ne.s32.totalorder %s97, %s111
      %p113 = scmp.eq.s32.totalorder %s24, 0
      %p114 = por %p112, %p113
      %s116 = sadd.s32 %s115, 1
      %p119 = scmp.eq.s32.totalorder %s18, 3
      %p120 = scmp.ne.s32.totalorder %s115, %s117
      %p121 = scmp.eq.s32.totalorder %s18, 0
      %p122 = por %p120, %p121
      %p123 = scmp.ne.s32.totalorder %s115, %s117
      %p124 = scmp.eq.s32.totalorder %s23, 3
      %p125 = por %p123, %p124
      %p126 = scmp.ne.s32.totalorder %s117, %s118
      %p127 = scmp.eq.s32.totalorder %s23, 0
      %p128 = por %p126, %p127
      %p129 = scmp.ne.s32.totalorder %s117, %s118
      %p130 = scmp.eq.s32.totalorder %s24, 3
      %p131 = por %p129, %p130
      %p133 = scmp.ne.s32.totalorder %s118, %s132
      %p134 = scmp.eq.s32.totalorder %s24, 0
      %p135 = por %p133, %p134
      %s136 = ssub.s32 %s18, %s25
      %p137 = scmp.eq.s32.totalorder %s136, 0
      %s139 = sadd.s32 %s138, 1
      %s140 = scalar_select %p137, %s138, %s139
      %p143 = pneg %p137
      %p144 = scmp.eq.s32.totalorder %s18, 3
      %p145 = por %p143, %p144
      %p146 = scmp.ne.s32.totalorder %s138, %s141
      %p147 = scmp.eq.s32.totalorder %s18, 0
      %p148 = por %p146, %p147
      %p149 = scmp.ne.s32.totalorder %s138, %s141
      %p150 = scmp.eq.s32.totalorder %s23, 3
      %p151 = por %p149, %p150
      %p152 = scmp.ne.s32.totalorder %s141, %s142
      %p153 = scmp.eq.s32.totalorder %s23, 0
      %p154 = por %p152, %p153
      %p155 = scmp.ne.s32.totalorder %s141, %s142
      %p156 = scmp.eq.s32.totalorder %s24, 3
      %p157 = por %p155, %p156
      %p159 = scmp.ne.s32.totalorder %s142, %s158
      %p160 = scmp.eq.s32.totalorder %s24, 0
      %p161 = por %p159, %p160
      %p162 = scmp.le.s32.totalorder 1, %s18
      %p163 = scmp.lt.s32.totalorder %s18, 5
      %p164 = pnand %p162, %p163
      %p165 = pneg %p164
      // Predicated region
      $region9: #{tpu_custom_call.1} parent=5 // pred_check
        _
      $region10: #{tpu_custom_call.1} parent=5 // pred_check_branch
        %167 = sbr.rel (%p164) target = $region12
      $region11: #{tpu_custom_call.1} parent=5 // pred_region
        %s168 = ssub.s32 %s18, 1
        // Predicated region
        $region13: #{tpu_custom_call.1} parent=11 // pred_check
          %p169 = pneg %p65
        $region14: #{tpu_custom_call.1} parent=11 // pred_check_branch
          %171 = sbr.rel (%p169) target = $region16
        $region15: #{tpu_custom_call.1} parent=11 // pred_region
          _
        $region16: #{tpu_custom_call.1} parent=11 // pred_fallthru
          _
        // Predicated region
        $region17: #{tpu_custom_call.1} parent=11 // pred_check
          %p172 = pneg %p86
        $region18: #{tpu_custom_call.1} parent=11 // pred_check_branch
          %174 = sbr.rel (%p172) target = $region20
        $region19: #{tpu_custom_call.1} parent=11 // pred_region
          _
        $region20: #{tpu_custom_call.1} parent=11 // pred_fallthru
          _
        // Predicated region
        $region21: #{tpu_custom_call.1} parent=11 // pred_check
          %p175 = pneg %p107
        $region22: #{tpu_custom_call.1} parent=11 // pred_check_branch
          %177 = sbr.rel (%p175) target = $region24
        $region23: #{tpu_custom_call.1} parent=11 // pred_region
          %s179 = ssub.s32 256, 256
          %180 = vsyncadd [#allocation6], %s179
          %s181 = sshll.u32 [#allocation5], 4
          %s182 = int_to_ptr.vmem [resolvable:$true] %s181
          %187 = dma.hbm_to_vmem [thread:$0]  %s3, 256, %s182, [#allocation6], 64, 64, 4
        $region24: #{tpu_custom_call.1} parent=11 // pred_fallthru
          _
        // Predicated region
        $region25: #{tpu_custom_call.1} parent=11 // pred_check
          %p188 = pneg %p128
        $region26: #{tpu_custom_call.1} parent=11 // pred_check_branch
          %190 = sbr.rel (%p188) target = $region28
        $region27: #{tpu_custom_call.1} parent=11 // pred_region
          _
        $region28: #{tpu_custom_call.1} parent=11 // pred_fallthru
          _
      $region12: #{tpu_custom_call.1} parent=5 // pred_fallthru
        _
      %p191 = scmp.lt.s32.totalorder %s18, 4
      // Predicated region
      $region29: #{tpu_custom_call.1} parent=5 // pred_check
        %p192 = pneg %p191
      $region30: #{tpu_custom_call.1} parent=5 // pred_check_branch
        %194 = sbr.rel (%p192) target = $region32
      $region31: #{tpu_custom_call.1} parent=5 // pred_region
        // Predicated region
        $region33: #{tpu_custom_call.1} parent=31 // pred_check
          %p195 = pneg %p38
        $region34: #{tpu_custom_call.1} parent=31 // pred_check_branch
          %197 = sbr.rel (%p195) target = $region36
        $region35: #{tpu_custom_call.1} parent=31 // pred_region
          %s198 = sand.u32 %s28, 1
          %s199 = scalar_lea.sflag [#allocation3], %s198
          %s200 = sand.u32 %s28, 1
          %s201 = smul.addr %s200, 8
          %s202 = scalar_lea.vmem [#allocation2], %s201
          %s204 = ssub.s32 128, 128
          %205 = vsyncadd %s199, %s204
          %s206 = smul.addr %s18, 128
          %s207 = scalar_lea.hbm %s0, %s206
          %s209 = sshll.u32 %s202, 4
          %s210 = int_to_ptr.vmem [resolvable:$true] %s209
          %212 = dma.hbm_to_vmem [thread:$0]  %s207, 128, %s210, %s199
        $region36: #{tpu_custom_call.1} parent=31 // pred_fallthru
          _
      $region32: #{tpu_custom_call.1} parent=5 // pred_fallthru
        _
      %p213 = scmp.le.s32.totalorder 1, %s18
      %p214 = scmp.lt.s32.totalorder %s18, 5
      %p215 = pnand %p213, %p214
      %p216 = pneg %p215
      // Predicated region
      $region37: #{tpu_custom_call.1} parent=5 // pred_check
        _
      $region38: #{tpu_custom_call.1} parent=5 // pred_check_branch
        %218 = sbr.rel (%p215) target = $region40
      $region39: #{tpu_custom_call.1} parent=5 // pred_region
        %s219 = ssub.s32 %s18, 1
        %s220 = sand.u32 %s31, 1
        %s221 = scalar_lea.sflag [#allocation3], %s220
        %s222 = sand.u32 %s31, 1
        %s223 = smul.addr %s222, 8
        %s224 = scalar_lea.vmem [#allocation2], %s223
        // Predicated region
        $region41: #{tpu_custom_call.1} parent=39 // pred_check
          %p225 = pneg %p44
        $region42: #{tpu_custom_call.1} parent=39 // pred_check_branch
          %227 = sbr.rel (%p225) target = $region44
        $region43: #{tpu_custom_call.1} parent=39 // pred_region
          %228 = dma.done %s221, 128
        $region44: #{tpu_custom_call.1} parent=39 // pred_fallthru
          _
        // Predicated region
        $region45: #{tpu_custom_call.1} parent=39 // pred_check
          %p229 = pneg %p107
        $region46: #{tpu_custom_call.1} parent=39 // pred_check_branch
          %231 = sbr.rel (%p229) target = $region48
        $region47: #{tpu_custom_call.1} parent=39 // pred_region
          %232 = dma.done [#allocation6], 256
        $region48: #{tpu_custom_call.1} parent=39 // pred_fallthru
          _
        %s233 = sand.u32 %s31, 1
        %s234 = scalar_lea.sflag [#allocation3], %s233
        %s235 = sand.u32 %s31, 1
        %s236 = smul.addr %s235, 8
        %s237 = scalar_lea.vmem [#allocation2], %s236
        %p238 = pneg %p44
        %p239 = pneg %p41
        %p240 = pneg %p65
        %p241 = pneg %p62
        %p242 = pneg %p86
        %p243 = pneg %p83
        %p244 = pneg %p107
        %p245 = pneg %p104
        %p246 = pneg %p128
        %p247 = pneg %p125
        %p248 = pneg %p154
        %p249 = pneg %p151
        %s250 = sand.u32 %s141, 1
        %s251 = scalar_lea.sflag [#allocation4], %s250
        %s252 = sand.u32 %s141, 1
        %s253 = smul.addr %s252, 8
        %s254 = scalar_lea.vmem [#allocation7], %s253
        %v256 = vld [vmem:[%s224] sm:$0xff]
        %v257 = vld [vmem:[%s1] sm:$0x1]
        %v258 = vld [vmem:[%s2] sm:$0x1]
        %vm259 = vcmask 261120
        %v260 = vsel %vm259, %v256, 0.0
        %261 = vadd.xlane.f32.xlu0 %v260
        %v262 = vpop.xlane.xlu0 %261
        %v263 = vrcp.pop 32.0
        %v264 = vmul.f32 %v262, %v263
        %v265 = vsub.f32 %v256, %v264
        %v266 = vmul.f32 %v265, %v265
        %v267 = vsel %vm259, %v266, 0.0
        %268 = vadd.xlane.f32.xlu0 %v267
        %v269 = vpop.xlane.xlu0 %268
        %v270 = vmul.f32 %v269, %v263
        %v271 = vadd.f32 %v270, 1e-05
        %v272 = vrsqrt.pop %v271
        %v273 = vmul.f32 %v265, %v272
        %v275 = vlaneseq
        %v276 = vshrl.u32 %v275, 7
        %v277 = vsub.s32 0, %v276
        %v278 = vrot.slane %v257, %v277
        %v280 = vmul.f32 %v273, %v278
        %v282 = vlaneseq
        %v283 = vshrl.u32 %v282, 7
        %v284 = vsub.s32 0, %v283
        %v285 = vrot.slane %v258, %v284
        %v287 = vadd.f32 %v280, %v285
        %v288 = vpack.c.bf16 %v287, %v287
        %v289 = vld [vmem:[#allocation5] sm:$0xf]
        %v290 = vld [vmem:[#allocation5 + $0x4] sm:$0xf]
        %v291 = vld [vmem:[#allocation5 + $0x8] sm:$0xf]
        %v292 = vld [vmem:[#allocation5 + $0xc] sm:$0xf]
        %v293 = vld [vmem:[%s4] sm:$0x1]
        %v295 = vlaneseq
        %v296 = vshrl.u32 %v295, 7
        %v297 = vsub.s32 0, %v296
        %v298 = vrot.slane %v293, %v297
        %v304 = vunpack.c.l.b16 %v289
        %v305 = vunpack.c.l.b16 %v290
        %v306 = vunpack.c.l.b16 %v291
        %v307 = vunpack.c.l.b16 %v292
        %v308 = vpack.c.b16 %v305, %v304
        %v309 = vpack.c.b16 %v307, %v306
        %v313 = vsel %vm259, %v288, 0
        %315 = vmatprep.subr.bf16.mxu0 0
        %316 = vmatpush1.bf16.msra.mxu0 0
        %317 = vmatprep.subr.bf16.mxu0 0
        %318 = vmatpush1.bf16.msra.mxu0 0
        %319 = vmatprep.subr.bf16.mxu0 0
        %320 = vmatpush1.bf16.msra.mxu0 0
        %321 = vmatprep.subr.bf16.mxu0 0
        %322 = vmatpush1.bf16.msra.mxu0 0
        %323 = vmatprep.subr.bf16.mxu0 0
        %324 = vmatpush1.bf16.msra.mxu0 0
        %325 = vmatprep.subr.bf16.mxu0 0
        %326 = vmatpush1.bf16.msra.mxu0 0
        %327 = vmatprep.subr.bf16.mxu0 0
        %328 = vmatpush1.bf16.msra.mxu0 %v309
        %329 = vmatprep.subr.bf16.mxu0 0
        %330 = vmatpush1.bf16.msra.mxu0 %v308
        %331 = vmatprep.subr.bf16.mxu0 0
        %332 = vmatpush2.bf16.msra.mxu0 0
        %333 = vmatprep.subr.bf16.mxu0 0
        %334 = vmatpush2.bf16.msra.mxu0 0
        %335 = vmatprep.subr.bf16.mxu0 0
        %336 = vmatpush2.bf16.msra.mxu0 0
        %337 = vmatprep.subr.bf16.mxu0 0
        %338 = vmatpush2.bf16.msra.mxu0 0
        %339 = vmatprep.subr.bf16.mxu0 0
        %340 = vmatpush2.bf16.msra.mxu0 0
        %341 = vmatprep.subr.bf16.mxu0 0
        %342 = vmatpush2.bf16.msra.mxu0 0
        %343 = vmatprep.subr.bf16.mxu0 0
        %344 = vmatpush2.bf16.msra.mxu0 0
        %345 = vmatprep.subr.bf16.mxu0 0
        %346 = vmatpush2.bf16.msra.mxu0 0
        %347 = vmatprep.mubr.bf16.mxu0 0
        %348 = vmatmul.mubr.bf16.gmra.mxu0 %v313
        %v349 = vpop.f32.mrf.mxu0
        %v350 = vadd.f32 %v298, %v349
        %v351 = vpop.f32.mrf.mxu0
        %v352 = vpop.f32.mrf.mxu0
        %v353 = vpop.f32.mrf.mxu0
        %354 = vdwg.mxu0
        %vm355 = vcmask 785408
        %356 = vst.msk [vmem:[%s254] sm:$0xff] %vm355, %v350
        %s357 = sand.u32 %s141, 1
        %s358 = scalar_lea.sflag [#allocation4], %s357
        %s359 = sand.u32 %s141, 1
        %s360 = smul.addr %s359, 8
        %s361 = scalar_lea.vmem [#allocation7], %s360
        // Predicated region
        $region49: #{tpu_custom_call.1} parent=39 // pred_check
          %p362 = pneg %p151
        $region50: #{tpu_custom_call.1} parent=39 // pred_check_branch
          %364 = sbr.rel (%p362) target = $region52
        $region51: #{tpu_custom_call.1} parent=39 // pred_region
          %s366 = ssub.s32 128, 128
          %367 = vsyncadd %s358, %s366
          %s368 = smul.addr %s23, 128
          %s369 = scalar_lea.hbm %s5, %s368
          %s371 = sshll.u32 %s361, 4
          %s372 = int_to_ptr.vmem [resolvable:$true] %s371
          %374 = dma.vmem_to_hbm [thread:$0]  %s372, 128, %s369, %s358
        $region52: #{tpu_custom_call.1} parent=39 // pred_fallthru
          _
      $region40: #{tpu_custom_call.1} parent=5 // pred_fallthru
        _
      %p375 = scmp.le.s32.totalorder 2, %s18
      // Predicated region
      $region53: #{tpu_custom_call.1} parent=5 // pred_check
        %p376 = pneg %p375
      $region54: #{tpu_custom_call.1} parent=5 // pred_check_branch
        %378 = sbr.rel (%p376) target = $region56
      $region55: #{tpu_custom_call.1} parent=5 // pred_region
        %s379 = ssub.s32 %s18, 2
        // Predicated region
        $region57: #{tpu_custom_call.1} parent=55 // pred_check
          %p380 = pneg %p157
        $region58: #{tpu_custom_call.1} parent=55 // pred_check_branch
          %382 = sbr.rel (%p380) target = $region60
        $region59: #{tpu_custom_call.1} parent=55 // pred_region
          %s383 = sand.u32 %s142, 1
          %s384 = scalar_lea.sflag [#allocation4], %s383
          %s385 = sand.u32 %s142, 1
          %s386 = smul.addr %s385, 8
          %s387 = scalar_lea.vmem [#allocation7], %s386
          %388 = dma.done %s384, 128
        $region60: #{tpu_custom_call.1} parent=55 // pred_fallthru
          _
      $region56: #{tpu_custom_call.1} parent=5 // pred_fallthru
        _
    $region6: #{tpu_custom_call.1} parent=1 // loop_footer
      %s22 = sadd.s32 1, %s18
    $region7: #{tpu_custom_call.1} parent=1 // loop_footer_branch
      %17 = sbr.rel target = $region3
    $region8: #{tpu_custom_call.1} parent=1 // loop_exit
      _
    %389 = vsyncpa [#allocation3], 1
    %s390 = scalar_lea.sflag [#allocation3], 1
    %391 = vsyncpa %s390, 1
    %392 = vsyncpa [#allocation6], 1
    %393 = vsyncpa [#allocation4], 1
    %s394 = scalar_lea.sflag [#allocation4], 1
    %395 = vsyncpa %s394, 1

</llo_original>
